<compile_context>
chip_gen: v7x
topology: tpu7x:2x2x1
jax: 0.10.0
libtpu: 0.0.40
codegen_flags: <defaults>
</compile_context>

<pallas_src>
import functools

import jax
import jax.numpy as jnp
import numpy as np
from jax.experimental import pallas as pl
from jax.experimental.pallas import tpu as pltpu

# ---------------- model hyper-parameters (small, consistent w/ module) -------
BATCH = 2
C_IN = 4           # input channels
H = W = 16         # spatial
FEATURE_SIZE = 32  # "featureSize" (backbone output channels)
CLASSES = 10       # "classes"
KH = KW = 3        # conv kernel of the stand-in backbone


# ---------------------------------------------------------------------------
# Fused kernel: im2col conv (bias folded into the weight) + ReLU ->
# global sum-pool per image (scale folded into fc weight) -> Linear classifier.
# Single grid step, whole batch in one matmul.
#
#   cols_ref : (B*H*W, KH*KW*Cin + 1)   -- patch matrix, last column == 1
#   wconv_ref: (KH*KW*Cin + 1, Cout)    -- conv weight with bias row appended
#   fcw_ref  : (Cout, CLASSES)          -- classifier weight, pre-scaled 1/(HW)
#   fcb_ref  : (1, CLASSES)             -- classifier bias
#   out_ref  : (B, CLASSES)
# ---------------------------------------------------------------------------
def _fused_kernel(cols_ref, wconv_ref, fcw_ref, fcb_ref, out_ref, *, bsz, hw):
    # One batched MXU matmul for the whole 3x3 conv (+ bias), then ReLU.
    act = jnp.maximum(
        jnp.dot(cols_ref[...], wconv_ref[...],
                preferred_element_type=jnp.float32),
        0.0)                                              # (B*H*W, Cout)

    # Global sum-pool per image via static, sublane-aligned slices (offsets
    # are multiples of 8).  The 1/(H*W) scale lives in fcw (wrapper-side).
    feats = [jnp.sum(act[b * hw:(b + 1) * hw, :], axis=0, keepdims=True)
             for b in range(bsz)]
    feat = jnp.concatenate(feats, axis=0)                 # (B, Cout)

    # classifier (torch.nn.Linear on squeezed pooled features)
    out_ref[...] = (
        jnp.dot(feat, fcw_ref[...], preferred_element_type=jnp.float32)
        + fcb_ref[0]
    )


def patnet_forward(x_nchw, params):
    """Mirrors PatnetCNNModel.forward: classifier(squeeze(net(x)))."""
    bsz, cin, h, w = x_nchw.shape
    kh, kw = params["conv_w"].shape[0], params["conv_w"].shape[1]
    cout = params["conv_w"].shape[-1]
    classes = params["fc_w"].shape[-1]

    # ---- wrapper-side layout prep (one fused XLA op, folded by jit) --------
    # NCHW -> NHWC, zero-pad, and im2col patch extraction; column order is
    # (kh, kw, c), matching conv_w.reshape(kh*kw*cin, cout).
    x = jnp.transpose(x_nchw, (0, 2, 3, 1))
    xp = jnp.pad(x, ((0, 0), (1, 1), (1, 1), (0, 0)))
    patches = [xp[:, i:i + h, j:j + w, :]
               for i in range(kh) for j in range(kw)]
    cols = jnp.concatenate(patches, axis=-1).reshape(bsz * h * w,
                                                     kh * kw * cin)
    # Fold the conv bias into the matmul: ones column + bias row (K -> K+1).
    cols = jnp.concatenate(
        [cols, jnp.ones((bsz * h * w, 1), cols.dtype)], axis=1)
    wconv = jnp.concatenate(
        [params["conv_w"].reshape(kh * kw * cin, cout), params["conv_b"]],
        axis=0)
    # Fold the 1/(H*W) average-pool scale into the classifier weight.
    fcw = params["fc_w"] * (1.0 / float(h * w))

    kern = functools.partial(_fused_kernel, bsz=bsz, hw=h * w)
    return pl.pallas_call(
        kern,
        out_shape=jax.ShapeDtypeStruct((bsz, classes), jnp.float32),
        compiler_params=pltpu.CompilerParams(),
    )(cols, wconv, fcw, params["fc_b"])


def init_params(key):
    k1, k2, k3, k4 = jax.random.split(key, 4)
    conv_w = jax.random.normal(k1, (KH, KW, C_IN, FEATURE_SIZE), jnp.float32) * 0.1
    conv_b = jax.random.normal(k2, (1, FEATURE_SIZE), jnp.float32) * 0.01
    fc_w = jax.random.normal(k3, (FEATURE_SIZE, CLASSES), jnp.float32) * 0.1
    fc_b = jax.random.normal(k4, (1, CLASSES), jnp.float32) * 0.01
    return {"conv_w": conv_w, "conv_b": conv_b, "fc_w": fc_w, "fc_b": fc_b}


def reference_forward(x_nchw, params):
    """Pure-JAX reference of the same math (sanity check)."""
    x = jnp.transpose(x_nchw, (0, 2, 3, 1))
    xp = jnp.pad(x, ((0, 0), (1, 1), (1, 1), (0, 0)))
    b, h, w, _ = x.shape
    acc = jnp.zeros((b, h, w, FEATURE_SIZE), jnp.float32)
    for kh in range(KH):
        for kw in range(KW):
            acc += jnp.einsum("bhwc,co->bhwo",
                              xp[:, kh:kh + h, kw:kw + w, :],
                              params["conv_w"][kh, kw])
    acc = jnp.maximum(acc + params["conv_b"][0], 0.0)
    feat = jnp.mean(acc, axis=(1, 2))
    return feat @ params["fc_w"] + params["fc_b"][0]


if __name__ == "__main__":
    key = jax.random.PRNGKey(0)
    kx, kp = jax.random.split(key)
    x = jax.random.normal(kx, (BATCH, C_IN, H, W), jnp.float32)   # NCHW input
    params = init_params(kp)

    fwd = jax.jit(patnet_forward)
    out = jax.block_until_ready(fwd(x, params))
    ref = jax.block_until_ready(reference_forward(x, params))

    assert out.shape == (BATCH, CLASSES)
    np.testing.assert_allclose(np.asarray(out), np.asarray(ref),
                               rtol=1e-4, atol=1e-4)
    print("KERNEL_OK")
</pallas_src>

<mosaic_0001>
module attributes {stable_mosaic.version = 11 : i64} {
  func.func @_fused_kernel(%arg0: memref<512x37xf32, #tpu.memory_space<vmem>>, %arg1: memref<37x32xf32, #tpu.memory_space<vmem>>, %arg2: memref<32x10xf32, #tpu.memory_space<vmem>>, %arg3: memref<1x10xf32, #tpu.memory_space<vmem>>, %arg4: memref<2x10xf32, #tpu.memory_space<vmem>>) attributes {dimension_semantics = [], scalar_prefetch = 0 : i64, scratch_operands = 0 : i64, tpu.core_type = #tpu.core_type<tc>} {
    %c0 = arith.constant 0 : index
    %c0_0 = arith.constant 0 : index
    %0 = vector.load %arg0[%c0, %c0_0] : memref<512x37xf32, #tpu.memory_space<vmem>>, vector<512x37xf32>
    %c0_1 = arith.constant 0 : index
    %c0_2 = arith.constant 0 : index
    %1 = vector.load %arg1[%c0_1, %c0_2] : memref<37x32xf32, #tpu.memory_space<vmem>>, vector<37x32xf32>
    %cst = arith.constant dense<0.000000e+00> : vector<512x32xf32>
    %2 = tpu.matmul %0, %1, %cst {dimension_numbers = #tpu.dot_dimension_numbers<[1], [0], [0], [1], [0, 0, 1, 1], [], []>} : vector<512x37xf32>, vector<37x32xf32>, vector<512x32xf32> -> vector<512x32xf32>
    %cst_3 = arith.constant 0.000000e+00 : f32
    %3 = vector.broadcast %cst_3 : f32 to vector<512x32xf32>
    %4 = arith.maximumf %2, %3 : vector<512x32xf32>
    %5 = vector.extract_strided_slice %4 {offsets = [0, 0], sizes = [256, 32], strides = [1, 1]} : vector<512x32xf32> to vector<256x32xf32>
    %cst_4 = arith.constant dense<0.000000e+00> : vector<32xf32>
    %6 = vector.multi_reduction <add>, %5, %cst_4 [0] : vector<256x32xf32> to vector<32xf32>
    %7 = vector.shape_cast %6 : vector<32xf32> to vector<1x32xf32>
    %8 = vector.extract_strided_slice %4 {offsets = [256, 0], sizes = [256, 32], strides = [1, 1]} : vector<512x32xf32> to vector<256x32xf32>
    %cst_5 = arith.constant dense<0.000000e+00> : vector<32xf32>
    %9 = vector.multi_reduction <add>, %8, %cst_5 [0] : vector<256x32xf32> to vector<32xf32>
    %10 = vector.shape_cast %9 : vector<32xf32> to vector<1x32xf32>
    %11 = tpu.concatenate %7, %10 in 0 : vector<1x32xf32>, vector<1x32xf32> -> vector<2x32xf32>
    %c0_6 = arith.constant 0 : index
    %c0_7 = arith.constant 0 : index
    %12 = vector.load %arg2[%c0_6, %c0_7] : memref<32x10xf32, #tpu.memory_space<vmem>>, vector<32x10xf32>
    %cst_8 = arith.constant dense<0.000000e+00> : vector<2x10xf32>
    %13 = tpu.matmul %11, %12, %cst_8 {dimension_numbers = #tpu.dot_dimension_numbers<[1], [0], [0], [1], [0, 0, 1, 1], [], []>} : vector<2x32xf32>, vector<32x10xf32>, vector<2x10xf32> -> vector<2x10xf32>
    %c0_9 = arith.constant 0 : index
    %c0_10 = arith.constant 0 : index
    %14 = vector.load %arg3[%c0_9, %c0_10] : memref<1x10xf32, #tpu.memory_space<vmem>>, vector<1x10xf32>
    %15 = vector.shape_cast %14 : vector<1x10xf32> to vector<10xf32>
    %16 = vector.shape_cast %15 : vector<10xf32> to vector<1x10xf32>
    %17 = vector.broadcast %16 : vector<1x10xf32> to vector<2x10xf32>
    %18 = arith.addf %13, %17 : vector<2x10xf32>
    %c0_11 = arith.constant 0 : index
    %c0_12 = arith.constant 0 : index
    %19 = vector.load %arg4[%c0_11, %c0_12] : memref<2x10xf32, #tpu.memory_space<vmem>>, vector<2x10xf32>
    tpu.vector_store %arg4[%c0_11, %c0_12], %18 {strides = array<i32>} : memref<2x10xf32, #tpu.memory_space<vmem>>, vector<2x10xf32>,
    return
  }
}

</mosaic_0001>

<llo_original>
// kernel: patnet_forward.1
$region0: #{patnet_forward.1}
  #allocation0 [shape = 'u32[]', space=smem, size = 0x4, offset = 0x4, fixed_abs, tag = 'smem constant byte address 0x4 - core index']
  #allocation1 [shape = 'u32[144,128]{1,0:T(1,128)}', space=vmem, size = 0x12000, scoped, tag = 'internal scratch']
  %s0 = inlined_call_operand.vmem [shape: f32[512,37], index: 0, kind: input, shape index: {}]
  %s1 = inlined_call_operand.vmem [shape: f32[37,32], index: 1, kind: input, shape index: {}]
  %s2 = inlined_call_operand.vmem [shape: f32[32,10], index: 2, kind: input, shape index: {}]
  %s3 = inlined_call_operand.vmem [shape: f32[1,10], index: 3, kind: input, shape index: {}]
  %s4 = inlined_call_operand.hbm [shape: f32[2,10], index: 4, kind: output, shape index: {}]
  %s5 = sld [smem:[#allocation0]]
  $region26: #{patnet_forward.1} parent=0
    _
  %s7 = ssub.s32 1, %s5
  %s8 = scalar_select 0, %s7, %s5
  $region1: #{patnet_forward.1} parent=0
    #allocation2 [shape = 'u8[1024]{0}', space=vmem, size = 0x400, scoped, tag = 'output window, operand 0, single buffered']
    #allocation3 [shape = 's32[1]{0}', space=sflag, size = 0x4, scoped, tag = 'scoped memory for patnet_forward.1']
    %9 = vsyncpa [#allocation3], 0
    // Predicated region
    $region2: #{patnet_forward.1} parent=1 // pred_check
      _
    $region3: #{patnet_forward.1} parent=1 // pred_check_branch
      %11 = sbr.rel (0) target = $region5
    $region4: #{patnet_forward.1} parent=1 // pred_region
      _
    $region5: #{patnet_forward.1} parent=1 // pred_fallthru
      _
    // Predicated region
    $region6: #{patnet_forward.1} parent=1 // pred_check
      _
    $region7: #{patnet_forward.1} parent=1 // pred_check_branch
      %13 = sbr.rel (0) target = $region9
    $region8: #{patnet_forward.1} parent=1 // pred_region
      _
    $region9: #{patnet_forward.1} parent=1 // pred_fallthru
      _
    // Predicated region
    $region10: #{patnet_forward.1} parent=1 // pred_check
      _
    $region11: #{patnet_forward.1} parent=1 // pred_check_branch
      %15 = sbr.rel (0) target = $region13
    $region12: #{patnet_forward.1} parent=1 // pred_region
      _
    $region13: #{patnet_forward.1} parent=1 // pred_fallthru
      _
    // Predicated region
    $region14: #{patnet_forward.1} parent=1 // pred_check
      _
    $region15: #{patnet_forward.1} parent=1 // pred_check_branch
      %17 = sbr.rel (0) target = $region17
    $region16: #{patnet_forward.1} parent=1 // pred_region
      _
    $region17: #{patnet_forward.1} parent=1 // pred_fallthru
      _
    %v18 = vld [vmem:[%s0] sm:$0xff]
    %v19 = vld [vmem:[%s0 + $0x8] sm:$0xff]
    %v20 = vld [vmem:[%s0 + $0x10] sm:$0xff]
    %v21 = vld [vmem:[%s0 + $0x18] sm:$0xff]
    %v22 = vld [vmem:[%s0 + $0x20] sm:$0xff]
    %v23 = vld [vmem:[%s0 + $0x28] sm:$0xff]
    %v24 = vld [vmem:[%s0 + $0x30] sm:$0xff]
    %v25 = vld [vmem:[%s0 + $0x38] sm:$0xff]
    %v26 = vld [vmem:[%s0 + $0x40] sm:$0xff]
    %v27 = vld [vmem:[%s0 + $0x48] sm:$0xff]
    %v28 = vld [vmem:[%s0 + $0x50] sm:$0xff]
    %v29 = vld [vmem:[%s0 + $0x58] sm:$0xff]
    %v30 = vld [vmem:[%s0 + $0x60] sm:$0xff]
    %v31 = vld [vmem:[%s0 + $0x68] sm:$0xff]
    %v32 = vld [vmem:[%s0 + $0x70] sm:$0xff]
    %v33 = vld [vmem:[%s0 + $0x78] sm:$0xff]
    %v34 = vld [vmem:[%s0 + $0x80] sm:$0xff]
    %v35 = vld [vmem:[%s0 + $0x88] sm:$0xff]
    %v36 = vld [vmem:[%s0 + $0x90] sm:$0xff]
    %v37 = vld [vmem:[%s0 + $0x98] sm:$0xff]
    %v38 = vld [vmem:[%s0 + $0xa0] sm:$0xff]
    %v39 = vld [vmem:[%s0 + $0xa8] sm:$0xff]
    %v40 = vld [vmem:[%s0 + $0xb0] sm:$0xff]
    %v41 = vld [vmem:[%s0 + $0xb8] sm:$0xff]
    %v42 = vld [vmem:[%s0 + $0xc0] sm:$0xff]
    %v43 = vld [vmem:[%s0 + $0xc8] sm:$0xff]
    %v44 = vld [vmem:[%s0 + $0xd0] sm:$0xff]
    %v45 = vld [vmem:[%s0 + $0xd8] sm:$0xff]
    %v46 = vld [vmem:[%s0 + $0xe0] sm:$0xff]
    %v47 = vld [vmem:[%s0 + $0xe8] sm:$0xff]
    %v48 = vld [vmem:[%s0 + $0xf0] sm:$0xff]
    %v49 = vld [vmem:[%s0 + $0xf8] sm:$0xff]
    %v50 = vld [vmem:[%s0 + $0x100] sm:$0xff]
    %v51 = vld [vmem:[%s0 + $0x108] sm:$0xff]
    %v52 = vld [vmem:[%s0 + $0x110] sm:$0xff]
    %v53 = vld [vmem:[%s0 + $0x118] sm:$0xff]
    %v54 = vld [vmem:[%s0 + $0x120] sm:$0xff]
    %v55 = vld [vmem:[%s0 + $0x128] sm:$0xff]
    %v56 = vld [vmem:[%s0 + $0x130] sm:$0xff]
    %v57 = vld [vmem:[%s0 + $0x138] sm:$0xff]
    %v58 = vld [vmem:[%s0 + $0x140] sm:$0xff]
    %v59 = vld [vmem:[%s0 + $0x148] sm:$0xff]
    %v60 = vld [vmem:[%s0 + $0x150] sm:$0xff]
    %v61 = vld [vmem:[%s0 + $0x158] sm:$0xff]
    %v62 = vld [vmem:[%s0 + $0x160] sm:$0xff]
    %v63 = vld [vmem:[%s0 + $0x168] sm:$0xff]
    %v64 = vld [vmem:[%s0 + $0x170] sm:$0xff]
    %v65 = vld [vmem:[%s0 + $0x178] sm:$0xff]
    %v66 = vld [vmem:[%s0 + $0x180] sm:$0xff]
    %v67 = vld [vmem:[%s0 + $0x188] sm:$0xff]
    %v68 = vld [vmem:[%s0 + $0x190] sm:$0xff]
    %v69 = vld [vmem:[%s0 + $0x198] sm:$0xff]
    %v70 = vld [vmem:[%s0 + $0x1a0] sm:$0xff]
    %v71 = vld [vmem:[%s0 + $0x1a8] sm:$0xff]
    %v72 = vld [vmem:[%s0 + $0x1b0] sm:$0xff]
    %v73 = vld [vmem:[%s0 + $0x1b8] sm:$0xff]
    %v74 = vld [vmem:[%s0 + $0x1c0] sm:$0xff]
    %v75 = vld [vmem:[%s0 + $0x1c8] sm:$0xff]
    %v76 = vld [vmem:[%s0 + $0x1d0] sm:$0xff]
    %v77 = vld [vmem:[%s0 + $0x1d8] sm:$0xff]
    %v78 = vld [vmem:[%s0 + $0x1e0] sm:$0xff]
    %v79 = vld [vmem:[%s0 + $0x1e8] sm:$0xff]
    %v80 = vld [vmem:[%s0 + $0x1f0] sm:$0xff]
    %v81 = vld [vmem:[%s0 + $0x1f8] sm:$0xff]
    %v82 = vld [vmem:[%s1] sm:$0xff]
    %v83 = vld [vmem:[%s1 + $0x8] sm:$0xff]
    %v84 = vld [vmem:[%s1 + $0x10] sm:$0xff]
    %v85 = vld [vmem:[%s1 + $0x18] sm:$0xff]
    %v86 = vld [vmem:[%s1 + $0x20] sm:$0x1f]
    %vm87 = vcmask 302080
    %v89 = vsel %vm87, %v18, 0
    %v92 = vsel %vm87, %v19, 0
    %v95 = vsel %vm87, %v20, 0
    %v98 = vsel %vm87, %v21, 0
    %v101 = vsel %vm87, %v22, 0
    %v104 = vsel %vm87, %v23, 0
    %v107 = vsel %vm87, %v24, 0
    %v110 = vsel %vm87, %v25, 0
    %v113 = vsel %vm87, %v26, 0
    %v116 = vsel %vm87, %v27, 0
    %v119 = vsel %vm87, %v28, 0
    %v122 = vsel %vm87, %v29, 0
    %v125 = vsel %vm87, %v30, 0
    %v128 = vsel %vm87, %v31, 0
    %v131 = vsel %vm87, %v32, 0
    %v134 = vsel %vm87, %v33, 0
    %v137 = vsel %vm87, %v34, 0
    %v140 = vsel %vm87, %v35, 0
    %v143 = vsel %vm87, %v36, 0
    %v146 = vsel %vm87, %v37, 0
    %v149 = vsel %vm87, %v38, 0
    %v152 = vsel %vm87, %v39, 0
    %v155 = vsel %vm87, %v40, 0
    %v158 = vsel %vm87, %v41, 0
    %v161 = vsel %vm87, %v42, 0
    %v164 = vsel %vm87, %v43, 0
    %v167 = vsel %vm87, %v44, 0
    %v170 = vsel %vm87, %v45, 0
    %v173 = vsel %vm87, %v46, 0
    %v176 = vsel %vm87, %v47, 0
    %v179 = vsel %vm87, %v48, 0
    %v182 = vsel %vm87, %v49, 0
    %v185 = vsel %vm87, %v50, 0
    %v188 = vsel %vm87, %v51, 0
    %v191 = vsel %vm87, %v52, 0
    %v194 = vsel %vm87, %v53, 0
    %v197 = vsel %vm87, %v54, 0
    %v200 = vsel %vm87, %v55, 0
    %v203 = vsel %vm87, %v56, 0
    %v206 = vsel %vm87, %v57, 0
    %v209 = vsel %vm87, %v58, 0
    %v212 = vsel %vm87, %v59, 0
    %v215 = vsel %vm87, %v60, 0
    %v218 = vsel %vm87, %v61, 0
    %v221 = vsel %vm87, %v62, 0
    %v224 = vsel %vm87, %v63, 0
    %v227 = vsel %vm87, %v64, 0
    %v230 = vsel %vm87, %v65, 0
    %v233 = vsel %vm87, %v66, 0
    %v236 = vsel %vm87, %v67, 0
    %v239 = vsel %vm87, %v68, 0
    %v242 = vsel %vm87, %v69, 0
    %v245 = vsel %vm87, %v70, 0
    %v248 = vsel %vm87, %v71, 0
    %v251 = vsel %vm87, %v72, 0
    %v254 = vsel %vm87, %v73, 0
    %v257 = vsel %vm87, %v74, 0
    %v260 = vsel %vm87, %v75, 0
    %v263 = vsel %vm87, %v76, 0
    %v266 = vsel %vm87, %v77, 0
    %v269 = vsel %vm87, %v78, 0
    %v272 = vsel %vm87, %v79, 0
    %v275 = vsel %vm87, %v80, 0
    %v278 = vsel %vm87, %v81, 0
    %vm280 = vcmask 1044480
    %v282 = vsel %vm280, %v86, 0
    %284 = vmatprep.subr.mxu0 0.0
    %285 = vmatpush1.msra.mxu0 %v82
    %286 = vmatprep.subr.mxu0 0.0
    %287 = vmatpush1.msra.mxu0 %v83
    %288 = vmatprep.subr.mxu0 0.0
    %289 = vmatpush1.msra.mxu0 %v84
    %290 = vmatprep.subr.mxu0 0.0
    %291 = vmatpush1.msra.mxu0 %v85
    %292 = vmatprep.subr.mxu0 0.0
    %293 = vmatpush1.msra.mxu0 %v282
    %294 = vmatprep.subr.mxu0 0.0
    %295 = vmatpush1.msra.mxu0 0.0
    %296 = vmatprep.subr.mxu0 0.0
    %297 = vmatpush1.msra.mxu0 0.0
    %298 = vmatprep.subr.mxu0 0.0
    %299 = vmatpush1.msra.mxu0 0.0
    %300 = vmatprep.subr.mxu0 0.0
    %301 = vmatpush1.msra.mxu0 0.0
    %302 = vmatprep.subr.mxu0 0.0
    %303 = vmatpush1.msra.mxu0 0.0
    %304 = vmatprep.subr.mxu0 0.0
    %305 = vmatpush1.msra.mxu0 0.0
    %306 = vmatprep.subr.mxu0 0.0
    %307 = vmatpush1.msra.mxu0 0.0
    %308 = vmatprep.subr.mxu0 0.0
    %309 = vmatpush1.msra.mxu0 0.0
    %310 = vmatprep.subr.mxu0 0.0
    %311 = vmatpush1.msra.mxu0 0.0
    %312 = vmatprep.subr.mxu0 0.0
    %313 = vmatpush1.msra.mxu0 0.0
    %314 = vmatprep.subr.mxu0 0.0
    %315 = vmatpush1.msra.mxu0 0.0
    %316 = vmatprep.subr.mxu0 0.0
    %317 = vmatpush1.msra.mxu0 0.0
    %318 = vmatprep.subr.mxu0 0.0
    %319 = vmatpush1.msra.mxu0 0.0
    %320 = vmatprep.subr.mxu0 0.0
    %321 = vmatpush1.msra.mxu0 0.0
    %322 = vmatprep.subr.mxu0 0.0
    %323 = vmatpush1.msra.mxu0 0.0
    %324 = vmatprep.subr.mxu0 0.0
    %325 = vmatpush1.msra.mxu0 0.0
    %326 = vmatprep.subr.mxu0 0.0
    %327 = vmatpush1.msra.mxu0 0.0
    %328 = vmatprep.subr.mxu0 0.0
    %329 = vmatpush1.msra.mxu0 0.0
    %330 = vmatprep.subr.mxu0 0.0
    %331 = vmatpush1.msra.mxu0 0.0
    %332 = vmatprep.subr.mxu0 0.0
    %333 = vmatpush1.msra.mxu0 0.0
    %334 = vmatprep.subr.mxu0 0.0
    %335 = vmatpush1.msra.mxu0 0.0
    %336 = vmatprep.subr.mxu0 0.0
    %337 = vmatpush1.msra.mxu0 0.0
    %338 = vmatprep.subr.mxu0 0.0
    %339 = vmatpush1.msra.mxu0 0.0
    %340 = vmatprep.subr.mxu0 0.0
    %341 = vmatpush1.msra.mxu0 0.0
    %342 = vmatprep.subr.mxu0 0.0
    %343 = vmatpush1.msra.mxu0 0.0
    %344 = vmatprep.subr.mxu0 0.0
    %345 = vmatpush1.msra.mxu0 0.0
    %346 = vmatprep.subr.mxu0 0.0
    %347 = vmatpush1.msra.mxu0 0.0
    %348 = vmatprep.mubr.f32.mxu0 0.0
    %349 = vmatmul.mubr.f32.gmra.mrb[0].mxu0 %v89
    %v350 = vpop.f32.mrb[0].mxu0
    %v351 = vadd.f32 0.0, %v350
    %v352 = vpop.f32.mrb[0].mxu0
    %353 = vmatprep.mubr.f32.mxu0 0.0
    %354 = vmatmul.mubr.f32.gmra.mrb[0].mxu0 %v92
    %v355 = vpop.f32.mrb[0].mxu0
    %v356 = vadd.f32 0.0, %v355
    %v357 = vpop.f32.mrb[0].mxu0
    %358 = vmatprep.mubr.f32.mxu0 0.0
    %359 = vmatmul.mubr.f32.gmra.mrb[0].mxu0 %v95
    %v360 = vpop.f32.mrb[0].mxu0
    %v361 = vadd.f32 0.0, %v360
    %v362 = vpop.f32.mrb[0].mxu0
    %363 = vmatprep.mubr.f32.mxu0 0.0
    %364 = vmatmul.mubr.f32.gmra.mrb[0].mxu0 %v98
    %v365 = vpop.f32.mrb[0].mxu0
    %v366 = vadd.f32 0.0, %v365
    %v367 = vpop.f32.mrb[0].mxu0
    %368 = vmatprep.mubr.f32.mxu0 0.0
    %369 = vmatmul.mubr.f32.gmra.mrb[0].mxu0 %v101
    %v370 = vpop.f32.mrb[0].mxu0
    %v371 = vadd.f32 0.0, %v370
    %v372 = vpop.f32.mrb[0].mxu0
    %373 = vmatprep.mubr.f32.mxu0 0.0
    %374 = vmatmul.mubr.f32.gmra.mrb[0].mxu0 %v104
    %v375 = vpop.f32.mrb[0].mxu0
    %v376 = vadd.f32 0.0, %v375
    %v377 = vpop.f32.mrb[0].mxu0
    %378 = vmatprep.mubr.f32.mxu0 0.0
    %379 = vmatmul.mubr.f32.gmra.mrb[0].mxu0 %v107
    %v380 = vpop.f32.mrb[0].mxu0
    %v381 = vadd.f32 0.0, %v380
    %v382 = vpop.f32.mrb[0].mxu0
    %383 = vmatprep.mubr.f32.mxu0 0.0
    %384 = vmatmul.mubr.f32.gmra.mrb[0].mxu0 %v110
    %v385 = vpop.f32.mrb[0].mxu0
    %v386 = vadd.f32 0.0, %v385
    %v387 = vpop.f32.mrb[0].mxu0
    %388 = vmatprep.mubr.f32.mxu0 0.0
    %389 = vmatmul.mubr.f32.gmra.mrb[0].mxu0 %v113
    %v390 = vpop.f32.mrb[0].mxu0
    %v391 = vadd.f32 0.0, %v390
    %v392 = vpop.f32.mrb[0].mxu0
    %393 = vmatprep.mubr.f32.mxu0 0.0
    %394 = vmatmul.mubr.f32.gmra.mrb[0].mxu0 %v116
    %v395 = vpop.f32.mrb[0].mxu0
    %v396 = vadd.f32 0.0, %v395
    %v397 = vpop.f32.mrb[0].mxu0
    %398 = vmatprep.mubr.f32.mxu0 0.0
    %399 = vmatmul.mubr.f32.gmra.mrb[0].mxu0 %v119
    %v400 = vpop.f32.mrb[0].mxu0
    %v401 = vadd.f32 0.0, %v400
    %v402 = vpop.f32.mrb[0].mxu0
    %403 = vmatprep.mubr.f32.mxu0 0.0
    %404 = vmatmul.mubr.f32.gmra.mrb[0].mxu0 %v122
    %v405 = vpop.f32.mrb[0].mxu0
    %v406 = vadd.f32 0.0, %v405
    %v407 = vpop.f32.mrb[0].mxu0
    %408 = vmatprep.mubr.f32.mxu0 0.0
    %409 = vmatmul.mubr.f32.gmra.mrb[0].mxu0 %v125
    %v410 = vpop.f32.mrb[0].mxu0
    %v411 = vadd.f32 0.0, %v410
    %v412 = vpop.f32.mrb[0].mxu0
    %413 = vmatprep.mubr.f32.mxu0 0.0
    %414 = vmatmul.mubr.f32.gmra.mrb[0].mxu0 %v128
    %v415 = vpop.f32.mrb[0].mxu0
    %v416 = vadd.f32 0.0, %v415
    %v417 = vpop.f32.mrb[0].mxu0
    %418 = vmatprep.mubr.f32.mxu0 0.0
    %419 = vmatmul.mubr.f32.gmra.mrb[0].mxu0 %v131
    %v420 = vpop.f32.mrb[0].mxu0
    %v421 = vadd.f32 0.0, %v420
    %v422 = vpop.f32.mrb[0].mxu0
    %423 = vmatprep.mubr.f32.mxu0 0.0
    %424 = vmatmul.mubr.f32.gmra.mrb[0].mxu0 %v134
    %v425 = vpop.f32.mrb[0].mxu0
    %v426 = vadd.f32 0.0, %v425
    %v427 = vpop.f32.mrb[0].mxu0
    %428 = vmatprep.mubr.f32.mxu0 0.0
    %429 = vmatmul.mubr.f32.gmra.mrb[0].mxu0 %v137
    %v430 = vpop.f32.mrb[0].mxu0
    %v431 = vadd.f32 0.0, %v430
    %v432 = vpop.f32.mrb[0].mxu0
    %433 = vmatprep.mubr.f32.mxu0 0.0
    %434 = vmatmul.mubr.f32.gmra.mrb[0].mxu0 %v140
    %v435 = vpop.f32.mrb[0].mxu0
    %v436 = vadd.f32 0.0, %v435
    %v437 = vpop.f32.mrb[0].mxu0
    %438 = vmatprep.mubr.f32.mxu0 0.0
    %439 = vmatmul.mubr.f32.gmra.mrb[0].mxu0 %v143
    %v440 = vpop.f32.mrb[0].mxu0
    %v441 = vadd.f32 0.0, %v440
    %v442 = vpop.f32.mrb[0].mxu0
    %443 = vmatprep.mubr.f32.mxu0 0.0
    %444 = vmatmul.mubr.f32.gmra.mrb[0].mxu0 %v146
    %v445 = vpop.f32.mrb[0].mxu0
    %v446 = vadd.f32 0.0, %v445
    %v447 = vpop.f32.mrb[0].mxu0
    %448 = vmatprep.mubr.f32.mxu0 0.0
    %449 = vmatmul.mubr.f32.gmra.mrb[0].mxu0 %v149
    %v450 = vpop.f32.mrb[0].mxu0
    %v451 = vadd.f32 0.0, %v450
    %v452 = vpop.f32.mrb[0].mxu0
    %453 = vmatprep.mubr.f32.mxu0 0.0
    %454 = vmatmul.mubr.f32.gmra.mrb[0].mxu0 %v152
    %v455 = vpop.f32.mrb[0].mxu0
    %v456 = vadd.f32 0.0, %v455
    %v457 = vpop.f32.mrb[0].mxu0
    %458 = vmatprep.mubr.f32.mxu0 0.0
    %459 = vmatmul.mubr.f32.gmra.mrb[0].mxu0 %v155
    %v460 = vpop.f32.mrb[0].mxu0
    %v461 = vadd.f32 0.0, %v460
    %v462 = vpop.f32.mrb[0].mxu0
    %463 = vmatprep.mubr.f32.mxu0 0.0
    %464 = vmatmul.mubr.f32.gmra.mrb[0].mxu0 %v158
    %v465 = vpop.f32.mrb[0].mxu0
    %v466 = vadd.f32 0.0, %v465
    %v467 = vpop.f32.mrb[0].mxu0
    %468 = vmatprep.mubr.f32.mxu0 0.0
    %469 = vmatmul.mubr.f32.gmra.mrb[0].mxu0 %v161
    %v470 = vpop.f32.mrb[0].mxu0
    %v471 = vadd.f32 0.0, %v470
    %v472 = vpop.f32.mrb[0].mxu0
    %473 = vmatprep.mubr.f32.mxu0 0.0
    %474 = vmatmul.mubr.f32.gmra.mrb[0].mxu0 %v164
    %v475 = vpop.f32.mrb[0].mxu0
    %v476 = vadd.f32 0.0, %v475
    %v477 = vpop.f32.mrb[0].mxu0
    %478 = vmatprep.mubr.f32.mxu0 0.0
    %479 = vmatmul.mubr.f32.gmra.mrb[0].mxu0 %v167
    %v480 = vpop.f32.mrb[0].mxu0
    %v481 = vadd.f32 0.0, %v480
    %v482 = vpop.f32.mrb[0].mxu0
    %483 = vmatprep.mubr.f32.mxu0 0.0
    %484 = vmatmul.mubr.f32.gmra.mrb[0].mxu0 %v170
    %v485 = vpop.f32.mrb[0].mxu0
    %v486 = vadd.f32 0.0, %v485
    %v487 = vpop.f32.mrb[0].mxu0
    %488 = vmatprep.mubr.f32.mxu0 0.0
    %489 = vmatmul.mubr.f32.gmra.mrb[0].mxu0 %v173
    %v490 = vpop.f32.mrb[0].mxu0
    %v491 = vadd.f32 0.0, %v490
    %v492 = vpop.f32.mrb[0].mxu0
    %493 = vmatprep.mubr.f32.mxu0 0.0
    %494 = vmatmul.mubr.f32.gmra.mrb[0].mxu0 %v176
    %v495 = vpop.f32.mrb[0].mxu0
    %v496 = vadd.f32 0.0, %v495
    %v497 = vpop.f32.mrb[0].mxu0
    %498 = vmatprep.mubr.f32.mxu0 0.0
    %499 = vmatmul.mubr.f32.gmra.mrb[0].mxu0 %v179
    %v500 = vpop.f32.mrb[0].mxu0
    %v501 = vadd.f32 0.0, %v500
    %v502 = vpop.f32.mrb[0].mxu0
    %503 = vmatprep.mubr.f32.mxu0 0.0
    %504 = vmatmul.mubr.f32.gmra.mrb[0].mxu0 %v182
    %v505 = vpop.f32.mrb[0].mxu0
    %v506 = vadd.f32 0.0, %v505
    %v507 = vpop.f32.mrb[0].mxu0
    %508 = vmatprep.mubr.f32.mxu0 0.0
    %509 = vmatmul.mubr.f32.gmra.mrb[0].mxu0 %v185
    %v510 = vpop.f32.mrb[0].mxu0
    %v511 = vadd.f32 0.0, %v510
    %v512 = vpop.f32.mrb[0].mxu0
    %513 = vmatprep.mubr.f32.mxu0 0.0
    %514 = vmatmul.mubr.f32.gmra.mrb[0].mxu0 %v188
    %v515 = vpop.f32.mrb[0].mxu0
    %v516 = vadd.f32 0.0, %v515
    %v517 = vpop.f32.mrb[0].mxu0
    %518 = vmatprep.mubr.f32.mxu0 0.0
    %519 = vmatmul.mubr.f32.gmra.mrb[0].mxu0 %v191
    %v520 = vpop.f32.mrb[0].mxu0
    %v521 = vadd.f32 0.0, %v520
    %v522 = vpop.f32.mrb[0].mxu0
    %523 = vmatprep.mubr.f32.mxu0 0.0
    %524 = vmatmul.mubr.f32.gmra.mrb[0].mxu0 %v194
    %v525 = vpop.f32.mrb[0].mxu0
    %v526 = vadd.f32 0.0, %v525
    %v527 = vpop.f32.mrb[0].mxu0
    %528 = vmatprep.mubr.f32.mxu0 0.0
    %529 = vmatmul.mubr.f32.gmra.mrb[0].mxu0 %v197
    %v530 = vpop.f32.mrb[0].mxu0
    %v531 = vadd.f32 0.0, %v530
    %v532 = vpop.f32.mrb[0].mxu0
    %533 = vmatprep.mubr.f32.mxu0 0.0
    %534 = vmatmul.mubr.f32.gmra.mrb[0].mxu0 %v200
    %v535 = vpop.f32.mrb[0].mxu0
    %v536 = vadd.f32 0.0, %v535
    %v537 = vpop.f32.mrb[0].mxu0
    %538 = vmatprep.mubr.f32.mxu0 0.0
    %539 = vmatmul.mubr.f32.gmra.mrb[0].mxu0 %v203
    %v540 = vpop.f32.mrb[0].mxu0
    %v541 = vadd.f32 0.0, %v540
    %v542 = vpop.f32.mrb[0].mxu0
    %543 = vmatprep.mubr.f32.mxu0 0.0
    %544 = vmatmul.mubr.f32.gmra.mrb[0].mxu0 %v206
    %v545 = vpop.f32.mrb[0].mxu0
    %v546 = vadd.f32 0.0, %v545
    %v547 = vpop.f32.mrb[0].mxu0
    %548 = vmatprep.mubr.f32.mxu0 0.0
    %549 = vmatmul.mubr.f32.gmra.mrb[0].mxu0 %v209
    %v550 = vpop.f32.mrb[0].mxu0
    %v551 = vadd.f32 0.0, %v550
    %v552 = vpop.f32.mrb[0].mxu0
    %553 = vmatprep.mubr.f32.mxu0 0.0
    %554 = vmatmul.mubr.f32.gmra.mrb[0].mxu0 %v212
    %v555 = vpop.f32.mrb[0].mxu0
    %v556 = vadd.f32 0.0, %v555
    %v557 = vpop.f32.mrb[0].mxu0
    %558 = vmatprep.mubr.f32.mxu0 0.0
    %559 = vmatmul.mubr.f32.gmra.mrb[0].mxu0 %v215
    %v560 = vpop.f32.mrb[0].mxu0
    %v561 = vadd.f32 0.0, %v560
    %v562 = vpop.f32.mrb[0].mxu0
    %563 = vmatprep.mubr.f32.mxu0 0.0
    %564 = vmatmul.mubr.f32.gmra.mrb[0].mxu0 %v218
    %v565 = vpop.f32.mrb[0].mxu0
    %v566 = vadd.f32 0.0, %v565
    %v567 = vpop.f32.mrb[0].mxu0
    %568 = vmatprep.mubr.f32.mxu0 0.0
    %569 = vmatmul.mubr.f32.gmra.mrb[0].mxu0 %v221
    %v570 = vpop.f32.mrb[0].mxu0
    %v571 = vadd.f32 0.0, %v570
    %v572 = vpop.f32.mrb[0].mxu0
    %573 = vmatprep.mubr.f32.mxu0 0.0
    %574 = vmatmul.mubr.f32.gmra.mrb[0].mxu0 %v224
    %v575 = vpop.f32.mrb[0].mxu0
    %v576 = vadd.f32 0.0, %v575
    %v577 = vpop.f32.mrb[0].mxu0
    %578 = vmatprep.mubr.f32.mxu0 0.0
    %579 = vmatmul.mubr.f32.gmra.mrb[0].mxu0 %v227
    %v580 = vpop.f32.mrb[0].mxu0
    %v581 = vadd.f32 0.0, %v580
    %v582 = vpop.f32.mrb[0].mxu0
    %583 = vmatprep.mubr.f32.mxu0 0.0
    %584 = vmatmul.mubr.f32.gmra.mrb[0].mxu0 %v230
    %v585 = vpop.f32.mrb[0].mxu0
    %v586 = vadd.f32 0.0, %v585
    %v587 = vpop.f32.mrb[0].mxu0
    %588 = vmatprep.mubr.f32.mxu0 0.0
    %589 = vmatmul.mubr.f32.gmra.mrb[0].mxu0 %v233
    %v590 = vpop.f32.mrb[0].mxu0
    %v591 = vadd.f32 0.0, %v590
    %v592 = vpop.f32.mrb[0].mxu0
    %593 = vmatprep.mubr.f32.mxu0 0.0
    %594 = vmatmul.mubr.f32.gmra.mrb[0].mxu0 %v236
    %v595 = vpop.f32.mrb[0].mxu0
    %v596 = vadd.f32 0.0, %v595
    %v597 = vpop.f32.mrb[0].mxu0
    %598 = vmatprep.mubr.f32.mxu0 0.0
    %599 = vmatmul.mubr.f32.gmra.mrb[0].mxu0 %v239
    %v600 = vpop.f32.mrb[0].mxu0
    %v601 = vadd.f32 0.0, %v600
    %v602 = vpop.f32.mrb[0].mxu0
    %603 = vmatprep.mubr.f32.mxu0 0.0
    %604 = vmatmul.mubr.f32.gmra.mrb[0].mxu0 %v242
    %v605 = vpop.f32.mrb[0].mxu0
    %v606 = vadd.f32 0.0, %v605
    %v607 = vpop.f32.mrb[0].mxu0
    %608 = vmatprep.mubr.f32.mxu0 0.0
    %609 = vmatmul.mubr.f32.gmra.mrb[0].mxu0 %v245
    %v610 = vpop.f32.mrb[0].mxu0
    %v611 = vadd.f32 0.0, %v610
    %v612 = vpop.f32.mrb[0].mxu0
    %613 = vmatprep.mubr.f32.mxu0 0.0
    %614 = vmatmul.mubr.f32.gmra.mrb[0].mxu0 %v248
    %v615 = vpop.f32.mrb[0].mxu0
    %v616 = vadd.f32 0.0, %v615
    %v617 = vpop.f32.mrb[0].mxu0
    %618 = vmatprep.mubr.f32.mxu0 0.0
    %619 = vmatmul.mubr.f32.gmra.mrb[0].mxu0 %v251
    %v620 = vpop.f32.mrb[0].mxu0
    %v621 = vadd.f32 0.0, %v620
    %v622 = vpop.f32.mrb[0].mxu0
    %623 = vmatprep.mubr.f32.mxu0 0.0
    %624 = vmatmul.mubr.f32.gmra.mrb[0].mxu0 %v254
    %v625 = vpop.f32.mrb[0].mxu0
    %v626 = vadd.f32 0.0, %v625
    %v627 = vpop.f32.mrb[0].mxu0
    %628 = vmatprep.mubr.f32.mxu0 0.0
    %629 = vmatmul.mubr.f32.gmra.mrb[0].mxu0 %v257
    %v630 = vpop.f32.mrb[0].mxu0
    %v631 = vadd.f32 0.0, %v630
    %v632 = vpop.f32.mrb[0].mxu0
    %633 = vmatprep.mubr.f32.mxu0 0.0
    %634 = vmatmul.mubr.f32.gmra.mrb[0].mxu0 %v260
    %v635 = vpop.f32.mrb[0].mxu0
    %v636 = vadd.f32 0.0, %v635
    %v637 = vpop.f32.mrb[0].mxu0
    %638 = vmatprep.mubr.f32.mxu0 0.0
    %639 = vmatmul.mubr.f32.gmra.mrb[0].mxu0 %v263
    %v640 = vpop.f32.mrb[0].mxu0
    %v641 = vadd.f32 0.0, %v640
    %v642 = vpop.f32.mrb[0].mxu0
    %643 = vmatprep.mubr.f32.mxu0 0.0
    %644 = vmatmul.mubr.f32.gmra.mrb[0].mxu0 %v266
    %v645 = vpop.f32.mrb[0].mxu0
    %v646 = vadd.f32 0.0, %v645
    %v647 = vpop.f32.mrb[0].mxu0
    %648 = vmatprep.mubr.f32.mxu0 0.0
    %649 = vmatmul.mubr.f32.gmra.mrb[0].mxu0 %v269
    %v650 = vpop.f32.mrb[0].mxu0
    %v651 = vadd.f32 0.0, %v650
    %v652 = vpop.f32.mrb[0].mxu0
    %653 = vmatprep.mubr.f32.mxu0 0.0
    %654 = vmatmul.mubr.f32.gmra.mrb[0].mxu0 %v272
    %v655 = vpop.f32.mrb[0].mxu0
    %v656 = vadd.f32 0.0, %v655
    %v657 = vpop.f32.mrb[0].mxu0
    %658 = vmatprep.mubr.f32.mxu0 0.0
    %659 = vmatmul.mubr.f32.gmra.mrb[0].mxu0 %v275
    %v660 = vpop.f32.mrb[0].mxu0
    %v661 = vadd.f32 0.0, %v660
    %v662 = vpop.f32.mrb[0].mxu0
    %663 = vmatprep.mubr.f32.mxu0 0.0
    %664 = vmatmul.mubr.f32.gmra.mrb[0].mxu0 %v278
    %v665 = vpop.f32.mrb[0].mxu0
    %v666 = vadd.f32 0.0, %v665
    %v667 = vpop.f32.mrb[0].mxu0
    %668 = vdwg.mxu0
    %v669 = vmax.f32 %v351, 0.0
    %v670 = vmax.f32 %v356, 0.0
    %v671 = vmax.f32 %v361, 0.0
    %v672 = vmax.f32 %v366, 0.0
    %v673 = vmax.f32 %v371, 0.0
    %v674 = vmax.f32 %v376, 0.0
    %v675 = vmax.f32 %v381, 0.0
    %v676 = vmax.f32 %v386, 0.0
    %v677 = vmax.f32 %v391, 0.0
    %v678 = vmax.f32 %v396, 0.0
    %v679 = vmax.f32 %v401, 0.0
    %v680 = vmax.f32 %v406, 0.0
    %v681 = vmax.f32 %v411, 0.0
    %v682 = vmax.f32 %v416, 0.0
    %v683 = vmax.f32 %v421, 0.0
    %v684 = vmax.f32 %v426, 0.0
    %v685 = vmax.f32 %v431, 0.0
    %v686 = vmax.f32 %v436, 0.0
    %v687 = vmax.f32 %v441, 0.0
    %v688 = vmax.f32 %v446, 0.0
    %v689 = vmax.f32 %v451, 0.0
    %v690 = vmax.f32 %v456, 0.0
    %v691 = vmax.f32 %v461, 0.0
    %v692 = vmax.f32 %v466, 0.0
    %v693 = vmax.f32 %v471, 0.0
    %v694 = vmax.f32 %v476, 0.0
    %v695 = vmax.f32 %v481, 0.0
    %v696 = vmax.f32 %v486, 0.0
    %v697 = vmax.f32 %v491, 0.0
    %v698 = vmax.f32 %v496, 0.0
    %v699 = vmax.f32 %v501, 0.0
    %v700 = vmax.f32 %v506, 0.0
    %v701 = vmax.f32 %v511, 0.0
    %v702 = vmax.f32 %v516, 0.0
    %v703 = vmax.f32 %v521, 0.0
    %v704 = vmax.f32 %v526, 0.0
    %v705 = vmax.f32 %v531, 0.0
    %v706 = vmax.f32 %v536, 0.0
    %v707 = vmax.f32 %v541, 0.0
    %v708 = vmax.f32 %v546, 0.0
    %v709 = vmax.f32 %v551, 0.0
    %v710 = vmax.f32 %v556, 0.0
    %v711 = vmax.f32 %v561, 0.0
    %v712 = vmax.f32 %v566, 0.0
    %v713 = vmax.f32 %v571, 0.0
    %v714 = vmax.f32 %v576, 0.0
    %v715 = vmax.f32 %v581, 0.0
    %v716 = vmax.f32 %v586, 0.0
    %v717 = vmax.f32 %v591, 0.0
    %v718 = vmax.f32 %v596, 0.0
    %v719 = vmax.f32 %v601, 0.0
    %v720 = vmax.f32 %v606, 0.0
    %v721 = vmax.f32 %v611, 0.0
    %v722 = vmax.f32 %v616, 0.0
    %v723 = vmax.f32 %v621, 0.0
    %v724 = vmax.f32 %v626, 0.0
    %v725 = vmax.f32 %v631, 0.0
    %v726 = vmax.f32 %v636, 0.0
    %v727 = vmax.f32 %v641, 0.0
    %v728 = vmax.f32 %v646, 0.0
    %v729 = vmax.f32 %v651, 0.0
    %v730 = vmax.f32 %v656, 0.0
    %v731 = vmax.f32 %v661, 0.0
    %v732 = vmax.f32 %v666, 0.0
    %vm733 = vcmask 261120
    %v734 = vsel %vm733, %v669, 0.0
    %v735 = vsel %vm733, %v670, 0.0
    %v736 = vadd.f32 %v734, %v735
    %v737 = vsel %vm733, %v671, 0.0
    %v738 = vadd.f32 %v736, %v737
    %v739 = vsel %vm733, %v672, 0.0
    %v740 = vadd.f32 %v738, %v739
    %v741 = vsel %vm733, %v673, 0.0
    %v742 = vadd.f32 %v740, %v741
    %v743 = vsel %vm733, %v674, 0.0
    %v744 = vadd.f32 %v742, %v743
    %v745 = vsel %vm733, %v675, 0.0
    %v746 = vadd.f32 %v744, %v745
    %v747 = vsel %vm733, %v676, 0.0
    %v748 = vadd.f32 %v746, %v747
    %v749 = vsel %vm733, %v677, 0.0
    %v750 = vadd.f32 %v748, %v749
    %v751 = vsel %vm733, %v678, 0.0
    %v752 = vadd.f32 %v750, %v751
    %v753 = vsel %vm733, %v679, 0.0
    %v754 = vadd.f32 %v752, %v753
    %v755 = vsel %vm733, %v680, 0.0
    %v756 = vadd.f32 %v754, %v755
    %v757 = vsel %vm733, %v681, 0.0
    %v758 = vadd.f32 %v756, %v757
    %v759 = vsel %vm733, %v682, 0.0
    %v760 = vadd.f32 %v758, %v759
    %v761 = vsel %vm733, %v683, 0.0
    %v762 = vadd.f32 %v760, %v761
    %v763 = vsel %vm733, %v684, 0.0
    %v764 = vadd.f32 %v762, %v763
    %v765 = vsel %vm733, %v685, 0.0
    %v766 = vadd.f32 %v764, %v765
    %v767 = vsel %vm733, %v686, 0.0
    %v768 = vadd.f32 %v766, %v767
    %v769 = vsel %vm733, %v687, 0.0
    %v770 = vadd.f32 %v768, %v769
    %v771 = vsel %vm733, %v688, 0.0
    %v772 = vadd.f32 %v770, %v771
    %v773 = vsel %vm733, %v689, 0.0
    %v774 = vadd.f32 %v772, %v773
    %v775 = vsel %vm733, %v690, 0.0
    %v776 = vadd.f32 %v774, %v775
    %v777 = vsel %vm733, %v691, 0.0
    %v778 = vadd.f32 %v776, %v777
    %v779 = vsel %vm733, %v692, 0.0
    %v780 = vadd.f32 %v778, %v779
    %v781 = vsel %vm733, %v693, 0.0
    %v782 = vadd.f32 %v780, %v781
    %v783 = vsel %vm733, %v694, 0.0
    %v784 = vadd.f32 %v782, %v783
    %v785 = vsel %vm733, %v695, 0.0
    %v786 = vadd.f32 %v784, %v785
    %v787 = vsel %vm733, %v696, 0.0
    %v788 = vadd.f32 %v786, %v787
    %v789 = vsel %vm733, %v697, 0.0
    %v790 = vadd.f32 %v788, %v789
    %v791 = vsel %vm733, %v698, 0.0
    %v792 = vadd.f32 %v790, %v791
    %v793 = vsel %vm733, %v699, 0.0
    %v794 = vadd.f32 %v792, %v793
    %v795 = vsel %vm733, %v700, 0.0
    %v796 = vadd.f32 %v794, %v795
    %v797 = vrot.slane %v796, 4
    %v798 = vadd.f32 %v796, %v797
    %v799 = vrot.slane %v798, 2
    %v800 = vadd.f32 %v798, %v799
    %v801 = vrot.slane %v800, 1
    %v802 = vadd.f32 %v800, %v801
    %v803 = vsel %vm733, %v701, 0.0
    %v804 = vsel %vm733, %v702, 0.0
    %v805 = vadd.f32 %v803, %v804
    %v806 = vsel %vm733, %v703, 0.0
    %v807 = vadd.f32 %v805, %v806
    %v808 = vsel %vm733, %v704, 0.0
    %v809 = vadd.f32 %v807, %v808
    %v810 = vsel %vm733, %v705, 0.0
    %v811 = vadd.f32 %v809, %v810
    %v812 = vsel %vm733, %v706, 0.0
    %v813 = vadd.f32 %v811, %v812
    %v814 = vsel %vm733, %v707, 0.0
    %v815 = vadd.f32 %v813, %v814
    %v816 = vsel %vm733, %v708, 0.0
    %v817 = vadd.f32 %v815, %v816
    %v818 = vsel %vm733, %v709, 0.0
    %v819 = vadd.f32 %v817, %v818
    %v820 = vsel %vm733, %v710, 0.0
    %v821 = vadd.f32 %v819, %v820
    %v822 = vsel %vm733, %v711, 0.0
    %v823 = vadd.f32 %v821, %v822
    %v824 = vsel %vm733, %v712, 0.0
    %v825 = vadd.f32 %v823, %v824
    %v826 = vsel %vm733, %v713, 0.0
    %v827 = vadd.f32 %v825, %v826
    %v828 = vsel %vm733, %v714, 0.0
    %v829 = vadd.f32 %v827, %v828
    %v830 = vsel %vm733, %v715, 0.0
    %v831 = vadd.f32 %v829, %v830
    %v832 = vsel %vm733, %v716, 0.0
    %v833 = vadd.f32 %v831, %v832
    %v834 = vsel %vm733, %v717, 0.0
    %v835 = vadd.f32 %v833, %v834
    %v836 = vsel %vm733, %v718, 0.0
    %v837 = vadd.f32 %v835, %v836
    %v838 = vsel %vm733, %v719, 0.0
    %v839 = vadd.f32 %v837, %v838
    %v840 = vsel %vm733, %v720, 0.0
    %v841 = vadd.f32 %v839, %v840
    %v842 = vsel %vm733, %v721, 0.0
    %v843 = vadd.f32 %v841, %v842
    %v844 = vsel %vm733, %v722, 0.0
    %v845 = vadd.f32 %v843, %v844
    %v846 = vsel %vm733, %v723, 0.0
    %v847 = vadd.f32 %v845, %v846
    %v848 = vsel %vm733, %v724, 0.0
    %v849 = vadd.f32 %v847, %v848
    %v850 = vsel %vm733, %v725, 0.0
    %v851 = vadd.f32 %v849, %v850
    %v852 = vsel %vm733, %v726, 0.0
    %v853 = vadd.f32 %v851, %v852
    %v854 = vsel %vm733, %v727, 0.0
    %v855 = vadd.f32 %v853, %v854
    %v856 = vsel %vm733, %v728, 0.0
    %v857 = vadd.f32 %v855, %v856
    %v858 = vsel %vm733, %v729, 0.0
    %v859 = vadd.f32 %v857, %v858
    %v860 = vsel %vm733, %v730, 0.0
    %v861 = vadd.f32 %v859, %v860
    %v862 = vsel %vm733, %v731, 0.0
    %v863 = vadd.f32 %v861, %v862
    %v864 = vsel %vm733, %v732, 0.0
    %v865 = vadd.f32 %v863, %v864
    %v866 = vrot.slane %v865, 4
    %v867 = vadd.f32 %v865, %v866
    %v868 = vrot.slane %v867, 2
    %v869 = vadd.f32 %v867, %v868
    %v870 = vrot.slane %v869, 1
    %v871 = vadd.f32 %v869, %v870
    %vm872 = vcmask 1040384
    %v873 = vsel %vm872, %v802, %v871
    %v874 = vld [vmem:[%s2] sm:$0xff]
    %v875 = vld [vmem:[%s2 + $0x8] sm:$0xff]
    %v876 = vld [vmem:[%s2 + $0x10] sm:$0xff]
    %v877 = vld [vmem:[%s2 + $0x18] sm:$0xff]
    %v878 = vld [vmem:[%s3] sm:$0x1]
    %v880 = vlaneseq
    %v881 = vshrl.u32 %v880, 7
    %v882 = vsub.s32 0, %v881
    %v883 = vrot.slane %v878, %v882
    %v886 = vsel %vm733, %v873, 0
    %888 = vmatprep.subr.mxu0 0.0
    %889 = vmatpush1.msra.mxu0 %v874
    %890 = vmatprep.subr.mxu0 0.0
    %891 = vmatpush1.msra.mxu0 %v875
    %892 = vmatprep.subr.mxu0 0.0
    %893 = vmatpush1.msra.mxu0 %v876
    %894 = vmatprep.subr.mxu0 0.0
    %895 = vmatpush1.msra.mxu0 %v877
    %896 = vmatprep.subr.mxu0 0.0
    %897 = vmatpush1.msra.mxu0 0.0
    %898 = vmatprep.subr.mxu0 0.0
    %899 = vmatpush1.msra.mxu0 0.0
    %900 = vmatprep.subr.mxu0 0.0
    %901 = vmatpush1.msra.mxu0 0.0
    %902 = vmatprep.subr.mxu0 0.0
    %903 = vmatpush1.msra.mxu0 0.0
    %904 = vmatprep.subr.mxu0 0.0
    %905 = vmatpush1.msra.mxu0 0.0
    %906 = vmatprep.subr.mxu0 0.0
    %907 = vmatpush1.msra.mxu0 0.0
    %908 = vmatprep.subr.mxu0 0.0
    %909 = vmatpush1.msra.mxu0 0.0
    %910 = vmatprep.subr.mxu0 0.0
    %911 = vmatpush1.msra.mxu0 0.0
    %912 = vmatprep.subr.mxu0 0.0
    %913 = vmatpush1.msra.mxu0 0.0
    %914 = vmatprep.subr.mxu0 0.0
    %915 = vmatpush1.msra.mxu0 0.0
    %916 = vmatprep.subr.mxu0 0.0
    %917 = vmatpush1.msra.mxu0 0.0
    %918 = vmatprep.subr.mxu0 0.0
    %919 = vmatpush1.msra.mxu0 0.0
    %920 = vmatprep.subr.mxu0 0.0
    %921 = vmatpush1.msra.mxu0 0.0
    %922 = vmatprep.subr.mxu0 0.0
    %923 = vmatpush1.msra.mxu0 0.0
    %924 = vmatprep.subr.mxu0 0.0
    %925 = vmatpush1.msra.mxu0 0.0
    %926 = vmatprep.subr.mxu0 0.0
    %927 = vmatpush1.msra.mxu0 0.0
    %928 = vmatprep.subr.mxu0 0.0
    %929 = vmatpush1.msra.mxu0 0.0
    %930 = vmatprep.subr.mxu0 0.0
    %931 = vmatpush1.msra.mxu0 0.0
    %932 = vmatprep.subr.mxu0 0.0
    %933 = vmatpush1.msra.mxu0 0.0
    %934 = vmatprep.subr.mxu0 0.0
    %935 = vmatpush1.msra.mxu0 0.0
    %936 = vmatprep.subr.mxu0 0.0
    %937 = vmatpush1.msra.mxu0 0.0
    %938 = vmatprep.subr.mxu0 0.0
    %939 = vmatpush1.msra.mxu0 0.0
    %940 = vmatprep.subr.mxu0 0.0
    %941 = vmatpush1.msra.mxu0 0.0
    %942 = vmatprep.subr.mxu0 0.0
    %943 = vmatpush1.msra.mxu0 0.0
    %944 = vmatprep.subr.mxu0 0.0
    %945 = vmatpush1.msra.mxu0 0.0
    %946 = vmatprep.subr.mxu0 0.0
    %947 = vmatpush1.msra.mxu0 0.0
    %948 = vmatprep.subr.mxu0 0.0
    %949 = vmatpush1.msra.mxu0 0.0
    %950 = vmatprep.subr.mxu0 0.0
    %951 = vmatpush1.msra.mxu0 0.0
    %952 = vmatprep.mubr.f32.mxu0 0.0
    %953 = vmatmul.mubr.f32.gmra.mrb[0].mxu0 %v886
    %v954 = vpop.f32.mrb[0].mxu0
    %v955 = vadd.f32 %v883, %v954
    %v956 = vpop.f32.mrb[0].mxu0
    %957 = vdwg.mxu0
    %vm958 = vcmask 74752
    %959 = vst.msk [vmem:[#allocation2] sm:$0x3] %vm958, %v955
    // Predicated region
    $region18: #{patnet_forward.1} parent=1 // pred_check
      _
    $region19: #{patnet_forward.1} parent=1 // pred_check_branch
      %961 = sbr.rel (0) target = $region21
    $region20: #{patnet_forward.1} parent=1 // pred_region
      %s963 = ssub.s32 32, 32
      %964 = vsyncadd [#allocation3], %s963
      %s966 = sshll.u32 [#allocation2], 4
      %s967 = int_to_ptr.vmem [resolvable:$true] %s966
      %969 = dma.vmem_to_hbm [thread:$0]  %s967, 32, %s4, [#allocation3]
    $region21: #{patnet_forward.1} parent=1 // pred_fallthru
      _
    // Predicated region
    $region22: #{patnet_forward.1} parent=1 // pred_check
      _
    $region23: #{patnet_forward.1} parent=1 // pred_check_branch
      %971 = sbr.rel (0) target = $region25
    $region24: #{patnet_forward.1} parent=1 // pred_region
      %972 = dma.done [#allocation3], 32
    $region25: #{patnet_forward.1} parent=1 // pred_fallthru
      _
    %973 = vsyncpa [#allocation3], 1

</llo_original>
